<compile_context>
chip_gen: v7x
topology: tpu7x:2x2x1
jax: 0.10.0
libtpu: 0.0.40
codegen_flags: <defaults>
</compile_context>

<pallas_src>
import jax
import jax.numpy as jnp
from jax.experimental import pallas as pl
from jax.experimental.pallas import tpu as pltpu


def dqn_mlp_kernel(x_ref, w1_ref, b1_ref, w2_ref, b2_ref, w3_ref, b3_ref, o_ref):
    # Layer 1: Linear + ReLU.  f32 matmul (K = n_obs is tiny), f32 accumulation.
    h1 = jnp.dot(x_ref[...], w1_ref[...], preferred_element_type=jnp.float32)
    h1 = jnp.maximum(h1 + b1_ref[...], 0.0)
    # Layer 2: Linear + ReLU.  bf16 operands, f32 accumulation on the MXU.
    h2 = jnp.dot(h1.astype(jnp.bfloat16), w2_ref[...],
                 preferred_element_type=jnp.float32)
    h2 = jnp.maximum(h2 + b2_ref[...], 0.0)
    # Layer 3: Linear (no activation), narrow (8-lane-padded) f32 store.
    o = jnp.dot(h2.astype(jnp.bfloat16), w3_ref[...],
                preferred_element_type=jnp.float32) + b3_ref[...]
    o_ref[...] = o.astype(o_ref.dtype)


def _round_up(x, m):
    return ((x + m - 1) // m) * m


def prepare_params(w1, b1, w2, b2, w3, b3):
    """One-time parameter prep (call at init / after each weight update, not per forward).

    w*: (in, out); b*: (out,) or (1, out).  Layer-1 stays f32 (tiny, better precision);
    layers 2/3 are cast to bf16; w3/b3 are lane-padded to a multiple of 8.
    """
    hidden = w1.shape[1]
    n_actions = w3.shape[1]
    n_out_pad = max(_round_up(n_actions, 8), 8)
    w1f = w1.astype(jnp.float32)
    b1r = jnp.reshape(b1, (1, hidden)).astype(jnp.float32)
    w2b = w2.astype(jnp.bfloat16)
    b2r = jnp.reshape(b2, (1, hidden)).astype(jnp.float32)
    w3p = jnp.zeros((hidden, n_out_pad), jnp.bfloat16).at[:, :n_actions].set(
        w3.astype(jnp.bfloat16))
    b3p = jnp.zeros((1, n_out_pad), jnp.float32).at[:, :n_actions].set(
        jnp.reshape(b3, (1, n_actions)).astype(jnp.float32))
    return {"w1": w1f, "b1": b1r, "w2": w2b, "b2": b2r, "w3": w3p, "b3": b3p,
            "n_actions": n_actions}


def dqn_forward(x, params, *, tb_target=1024):
    """x: (batch, n_obs) -> (batch, n_actions) f32 Q-values."""
    x = x.astype(jnp.float32)
    batch, n_obs = x.shape
    w1, b1, w2, b2, w3, b3 = (params[k] for k in ("w1", "b1", "w2", "b2", "w3", "b3"))
    n_actions = params["n_actions"]
    hidden = w1.shape[1]
    n_out_pad = w3.shape[1]

    # Batch tiling: even split (no near-empty trailing tile); >= 2 tiles when batch >= 32
    # so both v7x TensorCores get work; per-tile rows rounded to 16 for layout.
    num_tiles = pl.cdiv(batch, tb_target)
    if batch >= 32:
        num_tiles = max(num_tiles, 2)
    if num_tiles == 1:
        tb = batch                      # block dim == full array dim: legal, no padding
        batch_pad = batch
    else:
        tb = _round_up(pl.cdiv(batch, num_tiles), 16)
        batch_pad = tb * num_tiles
    xp = x if batch_pad == batch else jnp.pad(x, ((0, batch_pad - batch), (0, 0)))

    def const_spec(shape):
        # Constant index_map -> weight/bias stays resident in VMEM across the grid.
        return pl.BlockSpec(shape, lambda i: (0, 0))

    flops = 2 * batch_pad * (n_obs * hidden + hidden * hidden + hidden * n_out_pad)
    bytes_accessed = (
        batch_pad * n_obs * 4 + batch_pad * n_out_pad * 4        # streamed x + out
        + w1.size * 4 + (w2.size + w3.size) * 2                  # resident weights
        + (b1.size + b2.size + b3.size) * 4)                     # resident f32 biases

    out = pl.pallas_call(
        dqn_mlp_kernel,
        out_shape=jax.ShapeDtypeStruct((batch_pad, n_out_pad), jnp.float32),
        grid_spec=pltpu.PrefetchScalarGridSpec(
            num_scalar_prefetch=0,
            grid=(batch_pad // tb,),
            in_specs=[
                pl.BlockSpec((tb, n_obs), lambda i: (i, 0)),     # x: streamed per tile
                const_spec((n_obs, hidden)),                     # w1 (f32)
                const_spec((1, hidden)),                         # b1
                const_spec((hidden, hidden)),                    # w2 (bf16)
                const_spec((1, hidden)),                         # b2
                const_spec((hidden, n_out_pad)),                 # w3 (bf16, 8-lane pad)
                const_spec((1, n_out_pad)),                      # b3 (8-lane pad)
            ],
            out_specs=pl.BlockSpec((tb, n_out_pad), lambda i: (i, 0)),
        ),
        compiler_params=pltpu.CompilerParams(
            dimension_semantics=("parallel",),                   # megacore-shard the batch
        ),
        cost_estimate=pl.CostEstimate(
            flops=flops, transcendentals=0, bytes_accessed=bytes_accessed),
    )(xp, w1, b1, w2, b2, w3, b3)

    return out[:batch, :n_actions]


def init_linear_params(key, fan_in, fan_out):
    # Mirrors PyTorch nn.Linear default init: U(-1/sqrt(fan_in), 1/sqrt(fan_in)).
    kw, kb = jax.random.split(key)
    bound = 1.0 / jnp.sqrt(jnp.float32(fan_in))
    # Weight stored as (in, out) so the kernel computes x @ W (== PyTorch x @ W.T).
    w = jax.random.uniform(kw, (fan_in, fan_out), jnp.float32, -bound, bound)
    b = jax.random.uniform(kb, (1, fan_out), jnp.float32, -bound, bound)
    return w, b


def reference_forward(x, w1, b1, w2, b2, w3, b3):
    h1 = jnp.maximum(x @ w1 + b1, 0.0)
    h2 = jnp.maximum(h1 @ w2 + b2, 0.0)
    return h2 @ w3 + b3


if __name__ == "__main__":
    n_observations = 4   # e.g. CartPole observation dim
    n_actions = 2        # e.g. CartPole action dim
    hidden = 128
    batch = 2

    key = jax.random.PRNGKey(0)
    k_x, k1, k2, k3 = jax.random.split(key, 4)

    x = jax.random.normal(k_x, (batch, n_observations), jnp.float32)
    w1, b1 = init_linear_params(k1, n_observations, hidden)
    w2, b2 = init_linear_params(k2, hidden, hidden)
    w3, b3 = init_linear_params(k3, hidden, n_actions)

    params = prepare_params(w1, b1, w2, b2, w3, b3)   # one-time prep (hoisted out of forward)
    out = dqn_forward(x, params)
    out = jax.block_until_ready(out)

    # Full-f32 reference (kernel uses bf16 operands in layers 2/3 -> loose tol).
    ref_f32 = reference_forward(x, w1, b1, w2, b2, w3, b3)
    # Reference mirroring the kernel's bf16 operand rounding (tighter tol).
    w2b, w3b = (a.astype(jnp.bfloat16).astype(jnp.float32) for a in (w2, w3))
    h1 = jnp.maximum(x @ w1 + b1, 0.0)
    h2 = jnp.maximum(h1.astype(jnp.bfloat16).astype(jnp.float32) @ w2b + b2, 0.0)
    ref_bf16 = h2.astype(jnp.bfloat16).astype(jnp.float32) @ w3b + b3

    assert out.shape == (batch, n_actions)
    assert jnp.allclose(out, ref_bf16, atol=1e-2, rtol=1e-2)
    assert jnp.allclose(out, ref_f32, atol=5e-2, rtol=5e-2)

    print("KERNEL_OK")
</pallas_src>

<mosaic_0001>
module attributes {stable_mosaic.version = 11 : i64} {
  func.func @dqn_mlp_kernel(%arg0: i32, %arg1: memref<2x4xf32, #tpu.memory_space<vmem>>, %arg2: memref<4x128xf32, #tpu.memory_space<vmem>>, %arg3: memref<1x128xf32, #tpu.memory_space<vmem>>, %arg4: memref<128x128xbf16, #tpu.memory_space<vmem>>, %arg5: memref<1x128xf32, #tpu.memory_space<vmem>>, %arg6: memref<128x8xbf16, #tpu.memory_space<vmem>>, %arg7: memref<1x8xf32, #tpu.memory_space<vmem>>, %arg8: memref<2x8xf32, #tpu.memory_space<vmem>>) attributes {dimension_semantics = [#tpu.dimension_semantics<parallel>], iteration_bounds = array<i64: 1>, scalar_prefetch = 0 : i64, scratch_operands = 0 : i64, tpu.core_type = #tpu.core_type<tc>, window_params = [{transform_indices = @transform_0, window_bounds = array<i64: 2, 4>}, {pipeline_mode = #tpu.pipeline_mode<synchronous>, transform_indices = @transform_1, window_bounds = array<i64: 4, 128>}, {pipeline_mode = #tpu.pipeline_mode<synchronous>, transform_indices = @transform_2, window_bounds = array<i64: 1, 128>}, {pipeline_mode = #tpu.pipeline_mode<synchronous>, transform_indices = @transform_3, window_bounds = array<i64: 128, 128>}, {pipeline_mode = #tpu.pipeline_mode<synchronous>, transform_indices = @transform_4, window_bounds = array<i64: 1, 128>}, {pipeline_mode = #tpu.pipeline_mode<synchronous>, transform_indices = @transform_5, window_bounds = array<i64: 128, 8>}, {pipeline_mode = #tpu.pipeline_mode<synchronous>, transform_indices = @transform_6, window_bounds = array<i64: 1, 8>}, {transform_indices = @transform_7, window_bounds = array<i64: 2, 8>}]} {
    %c0 = arith.constant 0 : index
    %c0_0 = arith.constant 0 : index
    %0 = vector.load %arg1[%c0, %c0_0] : memref<2x4xf32, #tpu.memory_space<vmem>>, vector<2x4xf32>
    %c0_1 = arith.constant 0 : index
    %c0_2 = arith.constant 0 : index
    %1 = vector.load %arg2[%c0_1, %c0_2] : memref<4x128xf32, #tpu.memory_space<vmem>>, vector<4x128xf32>
    %cst = arith.constant dense<0.000000e+00> : vector<2x128xf32>
    %2 = tpu.matmul %0, %1, %cst {dimension_numbers = #tpu.dot_dimension_numbers<[1], [0], [0], [1], [0, 0, 1, 1], [], []>} : vector<2x4xf32>, vector<4x128xf32>, vector<2x128xf32> -> vector<2x128xf32>
    %c0_3 = arith.constant 0 : index
    %c0_4 = arith.constant 0 : index
    %3 = vector.load %arg3[%c0_3, %c0_4] : memref<1x128xf32, #tpu.memory_space<vmem>>, vector<1x128xf32>
    %4 = vector.broadcast %3 : vector<1x128xf32> to vector<2x128xf32>
    %5 = arith.addf %2, %4 : vector<2x128xf32>
    %cst_5 = arith.constant 0.000000e+00 : f32
    %6 = vector.broadcast %cst_5 : f32 to vector<2x128xf32>
    %7 = arith.maximumf %5, %6 : vector<2x128xf32>
    %8 = arith.truncf %7 : vector<2x128xf32> to vector<2x128xbf16>
    %c0_6 = arith.constant 0 : index
    %c0_7 = arith.constant 0 : index
    %9 = vector.load %arg4[%c0_6, %c0_7] : memref<128x128xbf16, #tpu.memory_space<vmem>>, vector<128x128xbf16>
    %cst_8 = arith.constant dense<0.000000e+00> : vector<2x128xf32>
    %10 = tpu.matmul %8, %9, %cst_8 {dimension_numbers = #tpu.dot_dimension_numbers<[1], [0], [0], [1], [0, 0, 1, 1], [], []>} : vector<2x128xbf16>, vector<128x128xbf16>, vector<2x128xf32> -> vector<2x128xf32>
    %c0_9 = arith.constant 0 : index
    %c0_10 = arith.constant 0 : index
    %11 = vector.load %arg5[%c0_9, %c0_10] : memref<1x128xf32, #tpu.memory_space<vmem>>, vector<1x128xf32>
    %12 = vector.broadcast %11 : vector<1x128xf32> to vector<2x128xf32>
    %13 = arith.addf %10, %12 : vector<2x128xf32>
    %cst_11 = arith.constant 0.000000e+00 : f32
    %14 = vector.broadcast %cst_11 : f32 to vector<2x128xf32>
    %15 = arith.maximumf %13, %14 : vector<2x128xf32>
    %16 = arith.truncf %15 : vector<2x128xf32> to vector<2x128xbf16>
    %c0_12 = arith.constant 0 : index
    %c0_13 = arith.constant 0 : index
    %17 = vector.load %arg6[%c0_12, %c0_13] : memref<128x8xbf16, #tpu.memory_space<vmem>>, vector<128x8xbf16>
    %cst_14 = arith.constant dense<0.000000e+00> : vector<2x8xf32>
    %18 = tpu.matmul %16, %17, %cst_14 {dimension_numbers = #tpu.dot_dimension_numbers<[1], [0], [0], [1], [0, 0, 1, 1], [], []>} : vector<2x128xbf16>, vector<128x8xbf16>, vector<2x8xf32> -> vector<2x8xf32>
    %c0_15 = arith.constant 0 : index
    %c0_16 = arith.constant 0 : index
    %19 = vector.load %arg7[%c0_15, %c0_16] : memref<1x8xf32, #tpu.memory_space<vmem>>, vector<1x8xf32>
    %20 = vector.broadcast %19 : vector<1x8xf32> to vector<2x8xf32>
    %21 = arith.addf %18, %20 : vector<2x8xf32>
    %c0_17 = arith.constant 0 : index
    %c0_18 = arith.constant 0 : index
    %22 = vector.load %arg8[%c0_17, %c0_18] : memref<2x8xf32, #tpu.memory_space<vmem>>, vector<2x8xf32>
    tpu.vector_store %arg8[%c0_17, %c0_18], %21 {strides = array<i32>} : memref<2x8xf32, #tpu.memory_space<vmem>>, vector<2x8xf32>,
    return
  }
  func.func @transform_0(%arg0: i32) -> (i32, i32) {
    %c0_i32 = arith.constant 0 : i32
    %c0_i32_0 = arith.constant 0 : i32
    return %arg0, %c0_i32 : i32, i32
  }
  func.func @transform_1(%arg0: i32) -> (i32, i32) {
    %c0_i32 = arith.constant 0 : i32
    %c0_i32_0 = arith.constant 0 : i32
    %c0_i32_1 = arith.constant 0 : i32
    return %c0_i32, %c0_i32_0 : i32, i32
  }
  func.func @transform_2(%arg0: i32) -> (i32, i32) {
    %c0_i32 = arith.constant 0 : i32
    %c0_i32_0 = arith.constant 0 : i32
    %c0_i32_1 = arith.constant 0 : i32
    return %c0_i32, %c0_i32_0 : i32, i32
  }
  func.func @transform_3(%arg0: i32) -> (i32, i32) {
    %c0_i32 = arith.constant 0 : i32
    %c0_i32_0 = arith.constant 0 : i32
    %c0_i32_1 = arith.constant 0 : i32
    return %c0_i32, %c0_i32_0 : i32, i32
  }
  func.func @transform_4(%arg0: i32) -> (i32, i32) {
    %c0_i32 = arith.constant 0 : i32
    %c0_i32_0 = arith.constant 0 : i32
    %c0_i32_1 = arith.constant 0 : i32
    return %c0_i32, %c0_i32_0 : i32, i32
  }
  func.func @transform_5(%arg0: i32) -> (i32, i32) {
    %c0_i32 = arith.constant 0 : i32
    %c0_i32_0 = arith.constant 0 : i32
    %c0_i32_1 = arith.constant 0 : i32
    return %c0_i32, %c0_i32_0 : i32, i32
  }
  func.func @transform_6(%arg0: i32) -> (i32, i32) {
    %c0_i32 = arith.constant 0 : i32
    %c0_i32_0 = arith.constant 0 : i32
    %c0_i32_1 = arith.constant 0 : i32
    return %c0_i32, %c0_i32_0 : i32, i32
  }
  func.func @transform_7(%arg0: i32) -> (i32, i32) {
    %c0_i32 = arith.constant 0 : i32
    %c0_i32_0 = arith.constant 0 : i32
    return %arg0, %c0_i32 : i32, i32
  }
}

</mosaic_0001>

<llo_original>
// kernel: tpu_custom_call.1
$region0: #{tpu_custom_call.1}
  #allocation0 [shape = 'u32[]', space=smem, size = 0x4, offset = 0x4, fixed_abs, tag = 'smem constant byte address 0x4 - core index']
  #allocation1 [shape = 'u32[144,128]{1,0:T(1,128)}', space=vmem, size = 0x12000, scoped, tag = 'internal scratch']
  %s0 = inlined_call_operand.vmem [shape: f32[2,4], index: 0, kind: input, shape index: {}]
  %s1 = inlined_call_operand.vmem [shape: f32[4,128], index: 1, kind: input, shape index: {}]
  %s2 = inlined_call_operand.vmem [shape: f32[1,128], index: 2, kind: input, shape index: {}]
  %s3 = inlined_call_operand.vmem [shape: bf16[128,128], index: 3, kind: input, shape index: {}]
  %s4 = inlined_call_operand.vmem [shape: f32[1,128], index: 4, kind: input, shape index: {}]
  %s5 = inlined_call_operand.vmem [shape: bf16[128,8], index: 5, kind: input, shape index: {}]
  %s6 = inlined_call_operand.vmem [shape: f32[1,8], index: 6, kind: input, shape index: {}]
  %s7 = inlined_call_operand.hbm [shape: f32[2,8], index: 7, kind: output, shape index: {}]
  %s8 = sld [smem:[#allocation0]]
  $region38: #{tpu_custom_call.1} parent=0
    _
  %s10 = ssub.s32 1, %s8
  %s11 = scalar_select 0, %s10, %s8
  $region1: #{tpu_custom_call.1} parent=0
    #allocation2 [shape = 'u8[1024]{0}', space=vmem, size = 0x400, scoped, tag = 'output window, operand 0, single buffered']
    #allocation3 [shape = 's32[1]{0}', space=sflag, size = 0x4, scoped, tag = 'scoped memory for tpu_custom_call.1']
    %12 = vsyncpa [#allocation3], 0
    // Predicated region
    $region2: #{tpu_custom_call.1} parent=1 // pred_check
      _
    $region3: #{tpu_custom_call.1} parent=1 // pred_check_branch
      %14 = sbr.rel (0) target = $region5
    $region4: #{tpu_custom_call.1} parent=1 // pred_region
      _
    $region5: #{tpu_custom_call.1} parent=1 // pred_fallthru
      _
    // Predicated region
    $region6: #{tpu_custom_call.1} parent=1 // pred_check
      _
    $region7: #{tpu_custom_call.1} parent=1 // pred_check_branch
      %16 = sbr.rel (0) target = $region9
    $region8: #{tpu_custom_call.1} parent=1 // pred_region
      _
    $region9: #{tpu_custom_call.1} parent=1 // pred_fallthru
      _
    // Predicated region
    $region10: #{tpu_custom_call.1} parent=1 // pred_check
      _
    $region11: #{tpu_custom_call.1} parent=1 // pred_check_branch
      %18 = sbr.rel (0) target = $region13
    $region12: #{tpu_custom_call.1} parent=1 // pred_region
      _
    $region13: #{tpu_custom_call.1} parent=1 // pred_fallthru
      _
    // Predicated region
    $region14: #{tpu_custom_call.1} parent=1 // pred_check
      _
    $region15: #{tpu_custom_call.1} parent=1 // pred_check_branch
      %20 = sbr.rel (0) target = $region17
    $region16: #{tpu_custom_call.1} parent=1 // pred_region
      _
    $region17: #{tpu_custom_call.1} parent=1 // pred_fallthru
      _
    // Predicated region
    $region18: #{tpu_custom_call.1} parent=1 // pred_check
      _
    $region19: #{tpu_custom_call.1} parent=1 // pred_check_branch
      %22 = sbr.rel (0) target = $region21
    $region20: #{tpu_custom_call.1} parent=1 // pred_region
      _
    $region21: #{tpu_custom_call.1} parent=1 // pred_fallthru
      _
    // Predicated region
    $region22: #{tpu_custom_call.1} parent=1 // pred_check
      _
    $region23: #{tpu_custom_call.1} parent=1 // pred_check_branch
      %24 = sbr.rel (0) target = $region25
    $region24: #{tpu_custom_call.1} parent=1 // pred_region
      _
    $region25: #{tpu_custom_call.1} parent=1 // pred_fallthru
      _
    // Predicated region
    $region26: #{tpu_custom_call.1} parent=1 // pred_check
      _
    $region27: #{tpu_custom_call.1} parent=1 // pred_check_branch
      %26 = sbr.rel (0) target = $region29
    $region28: #{tpu_custom_call.1} parent=1 // pred_region
      _
    $region29: #{tpu_custom_call.1} parent=1 // pred_fallthru
      _
    %v28 = vld [vmem:[%s0] sm:$0x3]
    %v29 = vld [vmem:[%s1] sm:$0xf]
    %v30 = vld [vmem:[%s2] sm:$0x1]
    %v32 = vlaneseq
    %v33 = vshrl.u32 %v32, 7
    %v34 = vsub.s32 0, %v33
    %v35 = vrot.slane %v30, %v34
    %vm37 = vcmask 31744
    %v39 = vsel %vm37, %v28, 0
    %vm41 = vcmask 1043456
    %v43 = vsel %vm41, %v29, 0
    %45 = vmatprep.subr.mxu0 0.0
    %46 = vmatpush1.msra.mxu0 %v43
    %47 = vmatprep.subr.mxu0 0.0
    %48 = vmatpush1.msra.mxu0 0.0
    %49 = vmatprep.subr.mxu0 0.0
    %50 = vmatpush1.msra.mxu0 0.0
    %51 = vmatprep.subr.mxu0 0.0
    %52 = vmatpush1.msra.mxu0 0.0
    %53 = vmatprep.subr.mxu0 0.0
    %54 = vmatpush1.msra.mxu0 0.0
    %55 = vmatprep.subr.mxu0 0.0
    %56 = vmatpush1.msra.mxu0 0.0
    %57 = vmatprep.subr.mxu0 0.0
    %58 = vmatpush1.msra.mxu0 0.0
    %59 = vmatprep.subr.mxu0 0.0
    %60 = vmatpush1.msra.mxu0 0.0
    %61 = vmatprep.subr.mxu0 0.0
    %62 = vmatpush1.msra.mxu0 0.0
    %63 = vmatprep.subr.mxu0 0.0
    %64 = vmatpush1.msra.mxu0 0.0
    %65 = vmatprep.subr.mxu0 0.0
    %66 = vmatpush1.msra.mxu0 0.0
    %67 = vmatprep.subr.mxu0 0.0
    %68 = vmatpush1.msra.mxu0 0.0
    %69 = vmatprep.subr.mxu0 0.0
    %70 = vmatpush1.msra.mxu0 0.0
    %71 = vmatprep.subr.mxu0 0.0
    %72 = vmatpush1.msra.mxu0 0.0
    %73 = vmatprep.subr.mxu0 0.0
    %74 = vmatpush1.msra.mxu0 0.0
    %75 = vmatprep.subr.mxu0 0.0
    %76 = vmatpush1.msra.mxu0 0.0
    %77 = vmatprep.subr.mxu0 0.0
    %78 = vmatpush1.msra.mxu0 0.0
    %79 = vmatprep.subr.mxu0 0.0
    %80 = vmatpush1.msra.mxu0 0.0
    %81 = vmatprep.subr.mxu0 0.0
    %82 = vmatpush1.msra.mxu0 0.0
    %83 = vmatprep.subr.mxu0 0.0
    %84 = vmatpush1.msra.mxu0 0.0
    %85 = vmatprep.subr.mxu0 0.0
    %86 = vmatpush1.msra.mxu0 0.0
    %87 = vmatprep.subr.mxu0 0.0
    %88 = vmatpush1.msra.mxu0 0.0
    %89 = vmatprep.subr.mxu0 0.0
    %90 = vmatpush1.msra.mxu0 0.0
    %91 = vmatprep.subr.mxu0 0.0
    %92 = vmatpush1.msra.mxu0 0.0
    %93 = vmatprep.subr.mxu0 0.0
    %94 = vmatpush1.msra.mxu0 0.0
    %95 = vmatprep.subr.mxu0 0.0
    %96 = vmatpush1.msra.mxu0 0.0
    %97 = vmatprep.subr.mxu0 0.0
    %98 = vmatpush1.msra.mxu0 0.0
    %99 = vmatprep.subr.mxu0 0.0
    %100 = vmatpush1.msra.mxu0 0.0
    %101 = vmatprep.subr.mxu0 0.0
    %102 = vmatpush1.msra.mxu0 0.0
    %103 = vmatprep.subr.mxu0 0.0
    %104 = vmatpush1.msra.mxu0 0.0
    %105 = vmatprep.subr.mxu0 0.0
    %106 = vmatpush1.msra.mxu0 0.0
    %107 = vmatprep.subr.mxu0 0.0
    %108 = vmatpush1.msra.mxu0 0.0
    %109 = vmatprep.mubr.f32.mxu0 0.0
    %110 = vmatmul.mubr.f32.gmra.mrb[0].mxu0 %v39
    %v111 = vpop.f32.mrb[0].mxu0
    %v112 = vadd.f32 %v35, %v111
    %v113 = vpop.f32.mrb[0].mxu0
    %114 = vdwg.mxu0
    %v115 = vmax.f32 %v112, 0.0
    %v116 = vpack.c.bf16 %v115, %v115
    %v117 = vld [vmem:[%s3] sm:$0xf]
    %v118 = vld [vmem:[%s3 + $0x4] sm:$0xf]
    %v119 = vld [vmem:[%s3 + $0x8] sm:$0xf]
    %v120 = vld [vmem:[%s3 + $0xc] sm:$0xf]
    %v121 = vld [vmem:[%s3 + $0x10] sm:$0xf]
    %v122 = vld [vmem:[%s3 + $0x14] sm:$0xf]
    %v123 = vld [vmem:[%s3 + $0x18] sm:$0xf]
    %v124 = vld [vmem:[%s3 + $0x1c] sm:$0xf]
    %v125 = vld [vmem:[%s3 + $0x20] sm:$0xf]
    %v126 = vld [vmem:[%s3 + $0x24] sm:$0xf]
    %v127 = vld [vmem:[%s3 + $0x28] sm:$0xf]
    %v128 = vld [vmem:[%s3 + $0x2c] sm:$0xf]
    %v129 = vld [vmem:[%s3 + $0x30] sm:$0xf]
    %v130 = vld [vmem:[%s3 + $0x34] sm:$0xf]
    %v131 = vld [vmem:[%s3 + $0x38] sm:$0xf]
    %v132 = vld [vmem:[%s3 + $0x3c] sm:$0xf]
    %v133 = vld [vmem:[%s4] sm:$0x1]
    %v135 = vlaneseq
    %v136 = vshrl.u32 %v135, 7
    %v137 = vsub.s32 0, %v136
    %v138 = vrot.slane %v133, %v137
    %v156 = vunpack.c.l.b16 %v117
    %v157 = vunpack.c.l.b16 %v118
    %v158 = vunpack.c.l.b16 %v119
    %v159 = vunpack.c.l.b16 %v120
    %v160 = vunpack.c.l.b16 %v121
    %v161 = vunpack.c.l.b16 %v122
    %v162 = vunpack.c.l.b16 %v123
    %v163 = vunpack.c.l.b16 %v124
    %v164 = vunpack.c.l.b16 %v125
    %v165 = vunpack.c.l.b16 %v126
    %v166 = vunpack.c.l.b16 %v127
    %v167 = vunpack.c.l.b16 %v128
    %v168 = vunpack.c.l.b16 %v129
    %v169 = vunpack.c.l.b16 %v130
    %v170 = vunpack.c.l.b16 %v131
    %v171 = vunpack.c.l.b16 %v132
    %v172 = vpack.c.b16 %v157, %v156
    %v173 = vpack.c.b16 %v159, %v158
    %v174 = vpack.c.b16 %v161, %v160
    %v175 = vpack.c.b16 %v163, %v162
    %v176 = vpack.c.b16 %v165, %v164
    %v177 = vpack.c.b16 %v167, %v166
    %v178 = vpack.c.b16 %v169, %v168
    %v179 = vpack.c.b16 %v171, %v170
    %188 = vmatprep.subr.bf16.mxu0 0
    %189 = vmatpush1.bf16.msra.mxu0 %v172
    %190 = vmatprep.subr.bf16.mxu0 0
    %191 = vmatpush1.bf16.msra.mxu0 %v173
    %192 = vmatprep.subr.bf16.mxu0 0
    %193 = vmatpush1.bf16.msra.mxu0 %v174
    %194 = vmatprep.subr.bf16.mxu0 0
    %195 = vmatpush1.bf16.msra.mxu0 %v175
    %196 = vmatprep.subr.bf16.mxu0 0
    %197 = vmatpush1.bf16.msra.mxu0 %v176
    %198 = vmatprep.subr.bf16.mxu0 0
    %199 = vmatpush1.bf16.msra.mxu0 %v177
    %200 = vmatprep.subr.bf16.mxu0 0
    %201 = vmatpush1.bf16.msra.mxu0 %v178
    %202 = vmatprep.subr.bf16.mxu0 0
    %203 = vmatpush1.bf16.msra.mxu0 %v179
    %204 = vmatprep.subr.bf16.mxu0 0
    %205 = vmatpush1.bf16.msra.mxu0 0
    %206 = vmatprep.subr.bf16.mxu0 0
    %207 = vmatpush1.bf16.msra.mxu0 0
    %208 = vmatprep.subr.bf16.mxu0 0
    %209 = vmatpush1.bf16.msra.mxu0 0
    %210 = vmatprep.subr.bf16.mxu0 0
    %211 = vmatpush1.bf16.msra.mxu0 0
    %212 = vmatprep.subr.bf16.mxu0 0
    %213 = vmatpush1.bf16.msra.mxu0 0
    %214 = vmatprep.subr.bf16.mxu0 0
    %215 = vmatpush1.bf16.msra.mxu0 0
    %216 = vmatprep.subr.bf16.mxu0 0
    %217 = vmatpush1.bf16.msra.mxu0 0
    %218 = vmatprep.subr.bf16.mxu0 0
    %219 = vmatpush1.bf16.msra.mxu0 0
    %220 = vmatprep.mubr.bf16.mxu0 0
    %221 = vmatmul.mubr.bf16.gmra.mrb[0].mxu0 %v116
    %v222 = vpop.f32.mrb[0].mxu0
    %v223 = vadd.f32 %v138, %v222
    %v224 = vpop.f32.mrb[0].mxu0
    %v225 = vpop.f32.mrb[0].mxu0
    %v226 = vpop.f32.mrb[0].mxu0
    %227 = vdwg.mxu0
    %v228 = vmax.f32 %v223, 0.0
    %v229 = vpack.c.bf16 %v228, %v228
    %v230 = vld [vmem:[%s5] sm:$0xf]
    %v231 = vld [vmem:[%s5 + $0x4] sm:$0xf]
    %v232 = vld [vmem:[%s5 + $0x8] sm:$0xf]
    %v233 = vld [vmem:[%s5 + $0xc] sm:$0xf]
    %v234 = vld [vmem:[%s5 + $0x10] sm:$0xf]
    %v235 = vld [vmem:[%s5 + $0x14] sm:$0xf]
    %v236 = vld [vmem:[%s5 + $0x18] sm:$0xf]
    %v237 = vld [vmem:[%s5 + $0x1c] sm:$0xf]
    %v238 = vld [vmem:[%s5 + $0x20] sm:$0xf]
    %v239 = vld [vmem:[%s5 + $0x24] sm:$0xf]
    %v240 = vld [vmem:[%s5 + $0x28] sm:$0xf]
    %v241 = vld [vmem:[%s5 + $0x2c] sm:$0xf]
    %v242 = vld [vmem:[%s5 + $0x30] sm:$0xf]
    %v243 = vld [vmem:[%s5 + $0x34] sm:$0xf]
    %v244 = vld [vmem:[%s5 + $0x38] sm:$0xf]
    %v245 = vld [vmem:[%s5 + $0x3c] sm:$0xf]
    %v246 = vld [vmem:[%s6] sm:$0x1]
    %v248 = vlaneseq
    %v249 = vshrl.u32 %v248, 7
    %v250 = vsub.s32 0, %v249
    %v251 = vrot.slane %v246, %v250
    %v269 = vunpack.c.l.b16 %v230
    %v270 = vunpack.c.l.b16 %v231
    %v271 = vunpack.c.l.b16 %v232
    %v272 = vunpack.c.l.b16 %v233
    %v273 = vunpack.c.l.b16 %v234
    %v274 = vunpack.c.l.b16 %v235
    %v275 = vunpack.c.l.b16 %v236
    %v276 = vunpack.c.l.b16 %v237
    %v277 = vunpack.c.l.b16 %v238
    %v278 = vunpack.c.l.b16 %v239
    %v279 = vunpack.c.l.b16 %v240
    %v280 = vunpack.c.l.b16 %v241
    %v281 = vunpack.c.l.b16 %v242
    %v282 = vunpack.c.l.b16 %v243
    %v283 = vunpack.c.l.b16 %v244
    %v284 = vunpack.c.l.b16 %v245
    %v285 = vpack.c.b16 %v270, %v269
    %v286 = vpack.c.b16 %v272, %v271
    %v287 = vpack.c.b16 %v274, %v273
    %v288 = vpack.c.b16 %v276, %v275
    %v289 = vpack.c.b16 %v278, %v277
    %v290 = vpack.c.b16 %v280, %v279
    %v291 = vpack.c.b16 %v282, %v281
    %v292 = vpack.c.b16 %v284, %v283
    %301 = vmatprep.subr.bf16.mxu0 0
    %302 = vmatpush1.bf16.msra.mxu0 %v285
    %303 = vmatprep.subr.bf16.mxu0 0
    %304 = vmatpush1.bf16.msra.mxu0 %v286
    %305 = vmatprep.subr.bf16.mxu0 0
    %306 = vmatpush1.bf16.msra.mxu0 %v287
    %307 = vmatprep.subr.bf16.mxu0 0
    %308 = vmatpush1.bf16.msra.mxu0 %v288
    %309 = vmatprep.subr.bf16.mxu0 0
    %310 = vmatpush1.bf16.msra.mxu0 %v289
    %311 = vmatprep.subr.bf16.mxu0 0
    %312 = vmatpush1.bf16.msra.mxu0 %v290
    %313 = vmatprep.subr.bf16.mxu0 0
    %314 = vmatpush1.bf16.msra.mxu0 %v291
    %315 = vmatprep.subr.bf16.mxu0 0
    %316 = vmatpush1.bf16.msra.mxu0 %v292
    %317 = vmatprep.subr.bf16.mxu0 0
    %318 = vmatpush1.bf16.msra.mxu0 0
    %319 = vmatprep.subr.bf16.mxu0 0
    %320 = vmatpush1.bf16.msra.mxu0 0
    %321 = vmatprep.subr.bf16.mxu0 0
    %322 = vmatpush1.bf16.msra.mxu0 0
    %323 = vmatprep.subr.bf16.mxu0 0
    %324 = vmatpush1.bf16.msra.mxu0 0
    %325 = vmatprep.subr.bf16.mxu0 0
    %326 = vmatpush1.bf16.msra.mxu0 0
    %327 = vmatprep.subr.bf16.mxu0 0
    %328 = vmatpush1.bf16.msra.mxu0 0
    %329 = vmatprep.subr.bf16.mxu0 0
    %330 = vmatpush1.bf16.msra.mxu0 0
    %331 = vmatprep.subr.bf16.mxu0 0
    %332 = vmatpush1.bf16.msra.mxu0 0
    %333 = vmatprep.mubr.bf16.mxu0 0
    %334 = vmatmul.mubr.bf16.gmra.mrb[0].mxu0 %v229
    %v335 = vpop.f32.mrb[0].mxu0
    %v336 = vadd.f32 %v251, %v335
    %v337 = vpop.f32.mrb[0].mxu0
    %v338 = vpop.f32.mrb[0].mxu0
    %v339 = vpop.f32.mrb[0].mxu0
    %340 = vdwg.mxu0
    %vm341 = vcmask 58368
    %342 = vst.msk [vmem:[#allocation2] sm:$0x3] %vm341, %v336
    // Predicated region
    $region30: #{tpu_custom_call.1} parent=1 // pred_check
      _
    $region31: #{tpu_custom_call.1} parent=1 // pred_check_branch
      %344 = sbr.rel (0) target = $region33
    $region32: #{tpu_custom_call.1} parent=1 // pred_region
      %s346 = ssub.s32 32, 32
      %347 = vsyncadd [#allocation3], %s346
      %s349 = sshll.u32 [#allocation2], 4
      %s350 = int_to_ptr.vmem [resolvable:$true] %s349
      %352 = dma.vmem_to_hbm [thread:$0]  %s350, 32, %s7, [#allocation3]
    $region33: #{tpu_custom_call.1} parent=1 // pred_fallthru
      _
    // Predicated region
    $region34: #{tpu_custom_call.1} parent=1 // pred_check
      _
    $region35: #{tpu_custom_call.1} parent=1 // pred_check_branch
      %354 = sbr.rel (0) target = $region37
    $region36: #{tpu_custom_call.1} parent=1 // pred_region
      %355 = dma.done [#allocation3], 32
    $region37: #{tpu_custom_call.1} parent=1 // pred_fallthru
      _
    %356 = vsyncpa [#allocation3], 1

</llo_original>
